<compile_context>
chip_gen: v6e
topology: v6e:2x2x1
jax: 0.10.0
libtpu: 0.0.40
codegen_flags: <defaults>
</compile_context>

<pallas_src>
import jax
import jax.numpy as jnp
from jax.experimental import pallas as pl
from jax.experimental.pallas import tpu as pltpu


def _round_up(x: int, m: int) -> int:
    return ((x + m - 1) // m) * m


# ----------------------------- fused linear (matmul + bias) kernel ----------
def _linear_bias_kernel(x_ref, w_ref, b_ref, o_ref):
    # Single MXU matmul with f32 accumulation, bias add on the VPU.
    o_ref[...] = (
        jnp.dot(x_ref[...], w_ref[...], preferred_element_type=jnp.float32)
        + b_ref[...]
    ).astype(o_ref.dtype)


# ----------------------------- one-time parameter prep ----------------------
def prepare_classification_head_params(weight, bias):
    """Hoisted, call-once prep of the static nn.Linear parameters.

    weight: (num_classes, embedding_dim) -- PyTorch layout
    bias:   (num_classes,)
    returns (w_p, b_p, num_classes) with
      w_p: (embedding_dim, N_pad) f32, N padded to a multiple of 128
      b_p: (1, N_pad) f32
    """
    N, K = weight.shape
    assert bias.shape == (N,)
    N_pad = _round_up(N, 128)
    w_p = jnp.pad(jnp.asarray(weight, jnp.float32).T, ((0, 0), (0, N_pad - N)))
    b_p = jnp.pad(jnp.asarray(bias, jnp.float32).reshape(1, N),
                  ((0, 0), (0, N_pad - N)))
    return w_p, b_p, N


# ----------------------------- forward ---------------------------------------
def mlp_classification_head(x, w_p, b_p, num_classes, *, block_m=512):
    """x: (..., embedding_dim) -> (..., num_classes)."""
    *lead, K = x.shape
    N_pad = w_p.shape[1]
    assert w_p.shape[0] == K and b_p.shape == (1, N_pad)

    # Flatten every leading dim into the matmul M dimension.
    x2 = x.reshape(-1, K).astype(jnp.float32)
    M = x2.shape[0]

    # Defensive: tile rows must respect the sublane rule when tiled.
    block_m = max(8, _round_up(block_m, 8))

    if M <= block_m:
        # Single grid step; full-dim block => no M padding, no per-call pad op.
        tm, M_pad = M, M
    else:
        # >= 2 grid steps so v7x's second TensorCore gets work; tm multiple of 8.
        tm = min(block_m, _round_up(pl.cdiv(M, 2), 8))
        M_pad = _round_up(M, tm)
        if M_pad != M:
            x2 = jnp.pad(x2, ((0, M_pad - M), (0, 0)))

    grid_m = M_pad // tm

    cost = pl.CostEstimate(
        flops=2 * M_pad * K * N_pad,
        transcendentals=0,
        bytes_accessed=4 * (M_pad * K + K * N_pad + N_pad + M_pad * N_pad),
    )

    out_p = pl.pallas_call(
        _linear_bias_kernel,
        out_shape=jax.ShapeDtypeStruct((M_pad, N_pad), jnp.float32),
        grid=(grid_m,),
        in_specs=[
            pl.BlockSpec((tm, K), lambda i: (i, 0)),        # K unpadded (full dim)
            pl.BlockSpec((K, N_pad), lambda i: (0, 0)),     # static, resident
            pl.BlockSpec((1, N_pad), lambda i: (0, 0)),     # static, resident
        ],
        out_specs=pl.BlockSpec((tm, N_pad), lambda i: (i, 0)),
        compiler_params=pltpu.CompilerParams(
            dimension_semantics=("parallel",)),             # v7x: shard M tiles
        cost_estimate=cost,
    )(x2, w_p, b_p)

    out = out_p[:M, :num_classes].astype(x.dtype)           # drop padding once
    return out.reshape(*lead, num_classes)


# ----------------------------- main ------------------------------------------
if __name__ == "__main__":
    embedding_dim, num_classes, batch = 48, 10, 2

    key = jax.random.PRNGKey(0)
    kx, kw, kb = jax.random.split(key, 3)

    x = jax.random.normal(kx, (batch, embedding_dim), jnp.float32)
    # PyTorch nn.Linear parameter layout: weight (out, in), bias (out,)
    weight = jax.random.normal(kw, (num_classes, embedding_dim), jnp.float32) * 0.05
    bias = jax.random.normal(kb, (num_classes,), jnp.float32) * 0.05

    # One-time (init-time) static parameter prep — hoisted out of the call path.
    w_p, b_p, n_cls = prepare_classification_head_params(weight, bias)

    out = mlp_classification_head(x, w_p, b_p, n_cls)
    out = jax.block_until_ready(out)

    # correctness vs. plain XLA reference (x @ W.T + b)
    ref = x @ weight.T + bias
    assert out.shape == (batch, num_classes) and out.dtype == jnp.float32
    assert jnp.allclose(out, ref, atol=1e-5, rtol=1e-5)

    print("KERNEL_OK")
</pallas_src>

<mosaic_0001>
module attributes {stable_mosaic.version = 11 : i64} {
  func.func @_linear_bias_kernel(%arg0: i32, %arg1: memref<2x48xf32, #tpu.memory_space<vmem>>, %arg2: memref<48x128xf32, #tpu.memory_space<vmem>>, %arg3: memref<1x128xf32, #tpu.memory_space<vmem>>, %arg4: memref<2x128xf32, #tpu.memory_space<vmem>>) attributes {dimension_semantics = [#tpu.dimension_semantics<parallel>], iteration_bounds = array<i64: 1>, scalar_prefetch = 0 : i64, scratch_operands = 0 : i64, tpu.core_type = #tpu.core_type<tc>, window_params = [{transform_indices = @transform_0, window_bounds = array<i64: 2, 48>}, {pipeline_mode = #tpu.pipeline_mode<synchronous>, transform_indices = @transform_1, window_bounds = array<i64: 48, 128>}, {pipeline_mode = #tpu.pipeline_mode<synchronous>, transform_indices = @transform_2, window_bounds = array<i64: 1, 128>}, {transform_indices = @transform_3, window_bounds = array<i64: 2, 128>}]} {
    %c0 = arith.constant 0 : index
    %c0_0 = arith.constant 0 : index
    %0 = vector.load %arg1[%c0, %c0_0] : memref<2x48xf32, #tpu.memory_space<vmem>>, vector<2x48xf32>
    %c0_1 = arith.constant 0 : index
    %c0_2 = arith.constant 0 : index
    %1 = vector.load %arg2[%c0_1, %c0_2] : memref<48x128xf32, #tpu.memory_space<vmem>>, vector<48x128xf32>
    %cst = arith.constant dense<0.000000e+00> : vector<2x128xf32>
    %2 = tpu.matmul %0, %1, %cst {dimension_numbers = #tpu.dot_dimension_numbers<[1], [0], [0], [1], [0, 0, 1, 1], [], []>} : vector<2x48xf32>, vector<48x128xf32>, vector<2x128xf32> -> vector<2x128xf32>
    %c0_3 = arith.constant 0 : index
    %c0_4 = arith.constant 0 : index
    %3 = vector.load %arg3[%c0_3, %c0_4] : memref<1x128xf32, #tpu.memory_space<vmem>>, vector<1x128xf32>
    %4 = vector.broadcast %3 : vector<1x128xf32> to vector<2x128xf32>
    %5 = arith.addf %2, %4 : vector<2x128xf32>
    %c0_5 = arith.constant 0 : index
    %c0_6 = arith.constant 0 : index
    %6 = vector.load %arg4[%c0_5, %c0_6] : memref<2x128xf32, #tpu.memory_space<vmem>>, vector<2x128xf32>
    tpu.vector_store %arg4[%c0_5, %c0_6], %5 {strides = array<i32>} : memref<2x128xf32, #tpu.memory_space<vmem>>, vector<2x128xf32>,
    return
  }
  func.func @transform_0(%arg0: i32) -> (i32, i32) {
    %c0_i32 = arith.constant 0 : i32
    %c0_i32_0 = arith.constant 0 : i32
    return %arg0, %c0_i32 : i32, i32
  }
  func.func @transform_1(%arg0: i32) -> (i32, i32) {
    %c0_i32 = arith.constant 0 : i32
    %c0_i32_0 = arith.constant 0 : i32
    %c0_i32_1 = arith.constant 0 : i32
    return %c0_i32, %c0_i32_0 : i32, i32
  }
  func.func @transform_2(%arg0: i32) -> (i32, i32) {
    %c0_i32 = arith.constant 0 : i32
    %c0_i32_0 = arith.constant 0 : i32
    %c0_i32_1 = arith.constant 0 : i32
    return %c0_i32, %c0_i32_0 : i32, i32
  }
  func.func @transform_3(%arg0: i32) -> (i32, i32) {
    %c0_i32 = arith.constant 0 : i32
    %c0_i32_0 = arith.constant 0 : i32
    return %arg0, %c0_i32 : i32, i32
  }
}

</mosaic_0001>

<llo_original>
// kernel: tpu_custom_call.1
$region0: #{tpu_custom_call.1}
  #allocation0 [shape = 'u32[]', space=smem, size = 0x4, offset = 0x4, fixed_abs, tag = 'smem constant byte address 0x4 - core index']
  #allocation1 [shape = 'u32[144,128]{1,0:T(1,128)}', space=vmem, size = 0x12000, scoped, tag = 'internal scratch']
  %s0 = inlined_call_operand.hbm [shape: f32[2,48], index: 0, kind: input, shape index: {}]
  %s1 = inlined_call_operand.hbm [shape: f32[48,128], index: 1, kind: input, shape index: {}]
  %s2 = inlined_call_operand.vmem [shape: f32[1,128], index: 2, kind: input, shape index: {}]
  %s3 = inlined_call_operand.hbm [shape: f32[2,128], index: 3, kind: output, shape index: {}]
  %s4 = sld [smem:[#allocation0]]
  $region30: #{tpu_custom_call.1} parent=0
    _
  %s6 = ssub.s32 1, %s4
  %s7 = scalar_select 0, %s6, %s4
  $region1: #{tpu_custom_call.1} parent=0
    #allocation2 [shape = 'u8[1024]{0}', space=vmem, size = 0x400, scoped, tag = 'input window, operand 0, single buffered']
    #allocation3 [shape = 's32[1]{0}', space=sflag, size = 0x4, scoped, tag = 'scoped memory for tpu_custom_call.1']
    #allocation4 [shape = 's32[1]{0}', space=sflag, size = 0x4, scoped, tag = 'scoped memory for tpu_custom_call.1']
    #allocation5 [shape = 'u8[24576]{0}', space=vmem, size = 0x6000, scoped, tag = 'input window, operand 1, single buffered']
    #allocation6 [shape = 's32[1]{0}', space=sflag, size = 0x4, scoped, tag = 'scoped memory for tpu_custom_call.1']
    #allocation7 [shape = 'u8[1024]{0}', space=vmem, size = 0x400, scoped, tag = 'output window, operand 0, single buffered']
    %8 = vsyncpa [#allocation3], 0
    %9 = vsyncpa [#allocation6], 0
    %10 = vsyncpa [#allocation4], 0
    // Predicated region
    $region2: #{tpu_custom_call.1} parent=1 // pred_check
      _
    $region3: #{tpu_custom_call.1} parent=1 // pred_check_branch
      %12 = sbr.rel (0) target = $region5
    $region4: #{tpu_custom_call.1} parent=1 // pred_region
      %s14 = ssub.s32 32, 32
      %15 = vsyncadd [#allocation3], %s14
      %s17 = sshll.u32 [#allocation2], 4
      %s18 = int_to_ptr.vmem [resolvable:$true] %s17
      %20 = dma.hbm_to_vmem [thread:$0]  %s0, 32, %s18, [#allocation3]
    $region5: #{tpu_custom_call.1} parent=1 // pred_fallthru
      _
    // Predicated region
    $region6: #{tpu_custom_call.1} parent=1 // pred_check
      _
    $region7: #{tpu_custom_call.1} parent=1 // pred_check_branch
      %22 = sbr.rel (0) target = $region9
    $region8: #{tpu_custom_call.1} parent=1 // pred_region
      %s24 = ssub.s32 768, 768
      %25 = vsyncadd [#allocation6], %s24
      %s26 = sshll.u32 [#allocation5], 4
      %s27 = int_to_ptr.vmem [resolvable:$true] %s26
      %32 = dma.hbm_to_vmem [thread:$0]  %s1, 768, %s27, [#allocation6], 128, 128, 8
    $region9: #{tpu_custom_call.1} parent=1 // pred_fallthru
      _
    // Predicated region
    $region10: #{tpu_custom_call.1} parent=1 // pred_check
      _
    $region11: #{tpu_custom_call.1} parent=1 // pred_check_branch
      %34 = sbr.rel (0) target = $region13
    $region12: #{tpu_custom_call.1} parent=1 // pred_region
      _
    $region13: #{tpu_custom_call.1} parent=1 // pred_fallthru
      _
    // Predicated region
    $region14: #{tpu_custom_call.1} parent=1 // pred_check
      _
    $region15: #{tpu_custom_call.1} parent=1 // pred_check_branch
      %36 = sbr.rel (0) target = $region17
    $region16: #{tpu_custom_call.1} parent=1 // pred_region
      %37 = dma.done [#allocation3], 32
    $region17: #{tpu_custom_call.1} parent=1 // pred_fallthru
      _
    // Predicated region
    $region18: #{tpu_custom_call.1} parent=1 // pred_check
      _
    $region19: #{tpu_custom_call.1} parent=1 // pred_check_branch
      %39 = sbr.rel (0) target = $region21
    $region20: #{tpu_custom_call.1} parent=1 // pred_region
      %40 = dma.done [#allocation6], 768
    $region21: #{tpu_custom_call.1} parent=1 // pred_fallthru
      _
    %v41 = vld [vmem:[#allocation2] sm:$0x3]
    %v42 = vld [vmem:[#allocation5] sm:$0xff]
    %v43 = vld [vmem:[#allocation5 + $0x8] sm:$0xff]
    %v44 = vld [vmem:[#allocation5 + $0x10] sm:$0xff]
    %v45 = vld [vmem:[#allocation5 + $0x18] sm:$0xff]
    %v46 = vld [vmem:[#allocation5 + $0x20] sm:$0xff]
    %v47 = vld [vmem:[#allocation5 + $0x28] sm:$0xff]
    %v48 = vld [vmem:[%s2] sm:$0x1]
    %v50 = vlaneseq
    %v51 = vshrl.u32 %v50, 7
    %v52 = vsub.s32 0, %v51
    %v53 = vrot.slane %v48, %v52
    %vm55 = vcmask 392192
    %v57 = vsel %vm55, %v41, 0
    %59 = vmatprep.subr.mxu0 0.0
    %60 = vmatpush1.msra.mxu0 0.0
    %61 = vmatprep.subr.mxu0 0.0
    %62 = vmatpush1.msra.mxu0 0.0
    %63 = vmatprep.subr.mxu0 0.0
    %64 = vmatpush1.msra.mxu0 0.0
    %65 = vmatprep.subr.mxu0 0.0
    %66 = vmatpush1.msra.mxu0 0.0
    %67 = vmatprep.subr.mxu0 0.0
    %68 = vmatpush1.msra.mxu0 0.0
    %69 = vmatprep.subr.mxu0 0.0
    %70 = vmatpush1.msra.mxu0 0.0
    %71 = vmatprep.subr.mxu0 0.0
    %72 = vmatpush1.msra.mxu0 0.0
    %73 = vmatprep.subr.mxu0 0.0
    %74 = vmatpush1.msra.mxu0 0.0
    %75 = vmatprep.subr.mxu0 0.0
    %76 = vmatpush1.msra.mxu0 0.0
    %77 = vmatprep.subr.mxu0 0.0
    %78 = vmatpush1.msra.mxu0 0.0
    %79 = vmatprep.subr.mxu0 0.0
    %80 = vmatpush1.msra.mxu0 %v47
    %81 = vmatprep.subr.mxu0 0.0
    %82 = vmatpush1.msra.mxu0 %v46
    %83 = vmatprep.subr.mxu0 0.0
    %84 = vmatpush1.msra.mxu0 %v45
    %85 = vmatprep.subr.mxu0 0.0
    %86 = vmatpush1.msra.mxu0 %v44
    %87 = vmatprep.subr.mxu0 0.0
    %88 = vmatpush1.msra.mxu0 %v43
    %89 = vmatprep.subr.mxu0 0.0
    %90 = vmatpush1.msra.mxu0 %v42
    %91 = vmatprep.subr.mxu0 0.0
    %92 = vmatpush2.msra.mxu0 0.0
    %93 = vmatprep.subr.mxu0 0.0
    %94 = vmatpush2.msra.mxu0 0.0
    %95 = vmatprep.subr.mxu0 0.0
    %96 = vmatpush2.msra.mxu0 0.0
    %97 = vmatprep.subr.mxu0 0.0
    %98 = vmatpush2.msra.mxu0 0.0
    %99 = vmatprep.subr.mxu0 0.0
    %100 = vmatpush2.msra.mxu0 0.0
    %101 = vmatprep.subr.mxu0 0.0
    %102 = vmatpush2.msra.mxu0 0.0
    %103 = vmatprep.subr.mxu0 0.0
    %104 = vmatpush2.msra.mxu0 0.0
    %105 = vmatprep.subr.mxu0 0.0
    %106 = vmatpush2.msra.mxu0 0.0
    %107 = vmatprep.subr.mxu0 0.0
    %108 = vmatpush2.msra.mxu0 0.0
    %109 = vmatprep.subr.mxu0 0.0
    %110 = vmatpush2.msra.mxu0 0.0
    %111 = vmatprep.subr.mxu0 0.0
    %112 = vmatpush2.msra.mxu0 0.0
    %113 = vmatprep.subr.mxu0 0.0
    %114 = vmatpush2.msra.mxu0 0.0
    %115 = vmatprep.subr.mxu0 0.0
    %116 = vmatpush2.msra.mxu0 0.0
    %117 = vmatprep.subr.mxu0 0.0
    %118 = vmatpush2.msra.mxu0 0.0
    %119 = vmatprep.subr.mxu0 0.0
    %120 = vmatpush2.msra.mxu0 0.0
    %121 = vmatprep.subr.mxu0 0.0
    %122 = vmatpush2.msra.mxu0 0.0
    %123 = vmatprep.mubr.f32.mxu0 0.0
    %124 = vmatmul.mubr.f32.gmra.mxu0 %v57
    %v125 = vpop.f32.mrf.mxu0
    %v126 = vadd.f32 %v53, %v125
    %v127 = vpop.f32.mrf.mxu0
    %128 = vdwg.mxu0
    %129 = vst [vmem:[#allocation7] sm:$0x3] %v126
    // Predicated region
    $region22: #{tpu_custom_call.1} parent=1 // pred_check
      _
    $region23: #{tpu_custom_call.1} parent=1 // pred_check_branch
      %131 = sbr.rel (0) target = $region25
    $region24: #{tpu_custom_call.1} parent=1 // pred_region
      %s133 = ssub.s32 32, 32
      %134 = vsyncadd [#allocation4], %s133
      %s136 = sshll.u32 [#allocation7], 4
      %s137 = int_to_ptr.vmem [resolvable:$true] %s136
      %139 = dma.vmem_to_hbm [thread:$0]  %s137, 32, %s3, [#allocation4]
    $region25: #{tpu_custom_call.1} parent=1 // pred_fallthru
      _
    // Predicated region
    $region26: #{tpu_custom_call.1} parent=1 // pred_check
      _
    $region27: #{tpu_custom_call.1} parent=1 // pred_check_branch
      %141 = sbr.rel (0) target = $region29
    $region28: #{tpu_custom_call.1} parent=1 // pred_region
      %142 = dma.done [#allocation4], 32
    $region29: #{tpu_custom_call.1} parent=1 // pred_fallthru
      _
    %143 = vsyncpa [#allocation3], 1
    %144 = vsyncpa [#allocation6], 1
    %145 = vsyncpa [#allocation4], 1

</llo_original>
